<compile_context>
chip_gen: v7x
topology: tpu7x:2x2x1
jax: 0.10.0
libtpu: 0.0.40
codegen_flags: <defaults>
</compile_context>

<pallas_src>
import functools

import jax
import jax.numpy as jnp
from jax.experimental import pallas as pl
from jax.experimental.pallas import tpu as pltpu


def _round_up(x, k):
    return ((x + k - 1) // k) * k


def _log_sigmoid(x):
    # numerically stable log(sigmoid(x)) = min(x, 0) - log(1 + exp(-|x|))
    return jnp.minimum(x, 0.0) - jnp.log(1.0 + jnp.exp(-jnp.abs(x)))


def _match_assignment_kernel(m, n, mp, np_,
                             d0_ref, d1_ref, w_ref, b_ref, wm_ref, bm_ref,
                             scores_ref, sim_ref):
    d0 = d0_ref[0]                     # (m, d_pad)  f32
    d1 = d1_ref[0]                     # (n, d_pad)  f32
    w = w_ref[...]                     # (d_pad, d_pad)  bf16, scale folded in
    bias = b_ref[...]                  # (1, d_pad)      f32,  scale folded in
    wm = wm_ref[...]                   # (1, d_pad)      f32  matchability weight
    bm = bm_ref[...]                   # (1, 1)          f32  matchability bias

    # Matchability logits: VPU multiply + lane reduction on the f32 descriptors
    # (no wasted MXU lanes, full precision for the log-sigmoid borders).
    z0 = jnp.sum(d0 * wm, axis=1, keepdims=True) + bm            # (m, 1)
    z1 = jnp.sum(d1 * wm, axis=1, keepdims=True) + bm            # (n, 1)

    # Projection on the MXU: bf16 inputs, f32 accumulate.  The 1/d**0.25 scale
    # is already folded into w / bias, so md* are the scaled descriptors.
    md0 = jnp.dot(d0.astype(jnp.bfloat16), w,
                  preferred_element_type=jnp.float32) + bias      # (m, d_pad)
    md1 = jnp.dot(d1.astype(jnp.bfloat16), w,
                  preferred_element_type=jnp.float32) + bias      # (n, d_pad)

    # Similarity matmul (padded lanes of md* are exactly zero).
    sim = jax.lax.dot_general(
        md0.astype(jnp.bfloat16), md1.astype(jnp.bfloat16),
        (((1,), (1,)), ((), ())),
        preferred_element_type=jnp.float32)                       # (m, n) f32
    sim_ref[0] = sim.astype(sim_ref.dtype)

    # Row log-softmax (lane reductions) with a single exp pass over (m, n).
    rowmax = jnp.max(sim, axis=1, keepdims=True)                  # (m, 1)
    e = jnp.exp(sim - rowmax)                                     # (m, n) one EUP pass
    row_lse = rowmax + jnp.log(jnp.sum(e, axis=1, keepdims=True))  # (m, 1)

    # Column log-sum-exp reuses the same exp pass: shift to the global max and
    # contract the row axis on the MXU (no sublane reduction, no 2nd exp pass).
    c = jnp.max(rowmax)                                           # scalar global max
    wrow_t = jnp.exp(rowmax - c).T                                # (1, m)
    col_sum = jnp.dot(wrow_t, e, preferred_element_type=jnp.float32)   # (1, n)
    # Guard against a whole column underflowing when its max is far below c.
    col_sum = jnp.maximum(col_sum, jnp.finfo(jnp.float32).tiny)
    col_lse = c + jnp.log(col_sum)                                # (1, n)

    lsz0 = _log_sigmoid(z0)                                       # (m, 1)
    lsz1 = _log_sigmoid(z1)                                       # (n, 1)

    # scores0 + scores1 + certainties folded into one expression:
    #   (sim - row_lse) + (sim - col_lse) + lsz0 + lsz1^T
    core = 2.0 * sim + (lsz0 - row_lse) + (lsz1.T - col_lse)      # (m, n)

    # Assemble the padded (mp, np_) scores block in-kernel; the HBM writeback is
    # one lane-dense DMA.  Element [m, n] stays 0 (matches torch new_full(0)).
    scores_ref[0] = jnp.zeros((mp, np_), scores_ref.dtype)
    scores_ref[0, 0:m, 0:n] = core.astype(scores_ref.dtype)
    scores_ref[0, 0:m, n:n + 1] = _log_sigmoid(-z0).astype(scores_ref.dtype)
    scores_ref[0, m:m + 1, 0:n] = _log_sigmoid(-z1).T.astype(scores_ref.dtype)


def match_assignment(desc0, desc1, w_proj, b_proj, w_match, b_match,
                     *, out_dtype=jnp.float32):
    """Pallas implementation of MatchAssignment.forward.

    Args:
      desc0: (B, M, D) float32
      desc1: (B, N, D) float32
      w_proj: (D, D)  PyTorch Linear weight (out, in) for final_proj
      b_proj: (D,)    final_proj bias
      w_match: (1, D) PyTorch Linear weight for matchability
      b_match: (1,)   matchability bias
      out_dtype: dtype of the returned scores / sim (bfloat16 halves HBM write
        traffic at realistic sizes; default float32 matches the torch module).
    Returns:
      scores: (B, M+1, N+1) out_dtype
      sim:    (B, M, N) out_dtype
    """
    b, m, d = desc0.shape
    _, n, _ = desc1.shape

    d_pad = _round_up(d, 128)
    mp = _round_up(m + 1, 8)
    np_ = _round_up(n + 1, 128)

    scale = 1.0 / (float(d) ** 0.25)

    # Fold the 1/d**0.25 scale into the projection weight / bias in f32, then
    # cast the weight to bf16 for the MXU (padded rows / cols are zero).
    w_all = jnp.zeros((d_pad, d_pad), jnp.float32)
    w_all = w_all.at[:d, :d].set(jnp.transpose(w_proj) * scale)
    w_all = w_all.astype(jnp.bfloat16)
    b_all = jnp.zeros((1, d_pad), jnp.float32).at[0, :d].set(b_proj * scale)

    wm_all = jnp.zeros((1, d_pad), jnp.float32).at[0, :d].set(w_match.reshape(d))
    bm_all = b_match.reshape(1, 1).astype(jnp.float32)

    # Feed f32 descriptors directly (bf16 cast happens in-kernel).  Only pad the
    # feature dim when it is not already a lane multiple.
    if d_pad != d:
        pad = d_pad - d
        d0_in = jnp.pad(desc0, ((0, 0), (0, 0), (0, pad)))
        d1_in = jnp.pad(desc1, ((0, 0), (0, 0), (0, pad)))
    else:
        d0_in, d1_in = desc0, desc1

    kernel = functools.partial(_match_assignment_kernel, m, n, mp, np_)

    out_shapes = (
        jax.ShapeDtypeStruct((b, mp, np_), out_dtype),   # padded scores block
        jax.ShapeDtypeStruct((b, m, n), out_dtype),      # sim
    )

    grid_spec = pltpu.PrefetchScalarGridSpec(
        num_scalar_prefetch=0,
        grid=(b,),
        in_specs=[
            pl.BlockSpec((1, m, d_pad), lambda i: (i, 0, 0)),   # desc0 tile (f32)
            pl.BlockSpec((1, n, d_pad), lambda i: (i, 0, 0)),   # desc1 tile (f32)
            pl.BlockSpec((d_pad, d_pad), lambda i: (0, 0)),     # projection weight
            pl.BlockSpec((1, d_pad), lambda i: (0, 0)),         # projection bias
            pl.BlockSpec((1, d_pad), lambda i: (0, 0)),         # matchability weight
            pl.BlockSpec((1, 1), lambda i: (0, 0)),             # matchability bias
        ],
        out_specs=[
            pl.BlockSpec((1, mp, np_), lambda i: (i, 0, 0)),
            pl.BlockSpec((1, m, n), lambda i: (i, 0, 0)),
        ],
    )

    # Rough per-call cost (helps XLA overlap neighbours with this mem-bound op).
    flops = b * (2 * (m + n) * d_pad * d_pad     # projection matmuls
                 + 2 * m * n * d_pad             # similarity matmul
                 + 2 * m * n)                    # column LSE contraction
    transcendentals = b * (m * n + 4 * (m + n))
    out_itemsize = jnp.dtype(out_dtype).itemsize
    bytes_accessed = int(
        (d0_in.size + d1_in.size) * 4
        + w_all.size * 2 + (b_all.size + wm_all.size + bm_all.size) * 4
        + b * (mp * np_ + m * n) * out_itemsize)
    cost = pl.CostEstimate(flops=int(flops),
                           transcendentals=int(transcendentals),
                           bytes_accessed=bytes_accessed)

    # Shape-dependent VMEM budget (double-buffered I/O + f32 temporaries),
    # clamped so it never exceeds v7x's 64 MiB physical VMEM.
    vmem_est = (
        2 * 4 * (m + n) * d_pad                       # double-buffered descriptor blocks
        + 2 * (2 * d_pad * d_pad + 3 * 4 * d_pad)     # weight + small biases
        + 2 * out_itemsize * (mp * np_ + m * n)       # double-buffered outputs
        + 8 * 4 * m * n                               # f32 (m, n) temporaries
        + 6 * 4 * (m + n) * d_pad                     # md0/md1 (+ bf16 copies)
        + (2 << 20))
    vmem_limit = int(min(max(vmem_est, 16 * 1024 * 1024), 64 * 1024 * 1024))

    scores_pad, sim = pl.pallas_call(
        kernel,
        out_shape=out_shapes,
        grid_spec=grid_spec,
        compiler_params=pltpu.CompilerParams(
            dimension_semantics=("parallel",),
            vmem_limit_bytes=vmem_limit),
        cost_estimate=cost,
    )(d0_in, d1_in, w_all, b_all, wm_all, bm_all)

    # Consumers that can index the padded block directly should do so; this
    # slice is only to return the exact module shape.
    scores = scores_pad[:, :m + 1, :n + 1]
    return scores, sim


def _reference(desc0, desc1, w_proj, b_proj, w_match, b_match):
    """Pure-JAX f32 reference matching the PyTorch semantics."""
    d = desc0.shape[-1]
    md0 = desc0 @ w_proj.T + b_proj
    md1 = desc1 @ w_proj.T + b_proj
    md0 = md0 / d ** 0.25
    md1 = md1 / d ** 0.25
    sim = jnp.einsum("bmd,bnd->bmn", md0, md1)
    z0 = desc0 @ w_match.T + b_match      # (b, m, 1)
    z1 = desc1 @ w_match.T + b_match      # (b, n, 1)
    cert = jax.nn.log_sigmoid(z0) + jnp.swapaxes(jax.nn.log_sigmoid(z1), 1, 2)
    scores0 = jax.nn.log_softmax(sim, axis=2)
    scores1 = jnp.swapaxes(
        jax.nn.log_softmax(jnp.swapaxes(sim, -1, -2), axis=2), -1, -2)
    b_, m, n = sim.shape
    scores = jnp.zeros((b_, m + 1, n + 1), sim.dtype)
    scores = scores.at[:, :m, :n].set(scores0 + scores1 + cert)
    scores = scores.at[:, :-1, -1].set(jax.nn.log_sigmoid(-z0[..., 0]))
    scores = scores.at[:, -1, :-1].set(jax.nn.log_sigmoid(-z1[..., 0]))
    return scores, sim


if __name__ == "__main__":
    B, M, N, D = 2, 8, 8, 32

    key = jax.random.PRNGKey(0)
    k0, k1, k2, k3, k4, k5 = jax.random.split(key, 6)

    desc0 = jax.random.normal(k0, (B, M, D), dtype=jnp.float32)
    desc1 = jax.random.normal(k1, (B, N, D), dtype=jnp.float32)

    # Deterministic parameter init (PyTorch Linear shapes: weight = (out, in)).
    w_proj = jax.random.normal(k2, (D, D), dtype=jnp.float32) * (1.0 / D ** 0.5)
    b_proj = jax.random.normal(k3, (D,), dtype=jnp.float32) * 0.1
    w_match = jax.random.normal(k4, (1, D), dtype=jnp.float32) * (1.0 / D ** 0.5)
    b_match = jax.random.normal(k5, (1,), dtype=jnp.float32) * 0.1

    scores, sim = match_assignment(desc0, desc1, w_proj, b_proj, w_match, b_match)
    jax.block_until_ready((scores, sim))

    scores_ref, sim_ref = _reference(desc0, desc1, w_proj, b_proj, w_match, b_match)
    assert scores.shape == (B, M + 1, N + 1) and sim.shape == (B, M, N)
    # bf16 MXU inputs (f32 accumulation) -> looser tolerance than a pure-f32 ref.
    assert jnp.allclose(sim, sim_ref, atol=5e-2, rtol=5e-2)
    assert jnp.allclose(scores, scores_ref, atol=1e-1, rtol=5e-2)

    print("KERNEL_OK")
</pallas_src>

<mosaic_0001>
module attributes {stable_mosaic.version = 11 : i64} {
  func.func @_match_assignment_kernel(%arg0: i32, %arg1: memref<1x8x128xf32, #tpu.memory_space<vmem>>, %arg2: memref<1x8x128xf32, #tpu.memory_space<vmem>>, %arg3: memref<128x128xbf16, #tpu.memory_space<vmem>>, %arg4: memref<1x128xf32, #tpu.memory_space<vmem>>, %arg5: memref<1x128xf32, #tpu.memory_space<vmem>>, %arg6: memref<1x1xf32, #tpu.memory_space<vmem>>, %arg7: memref<1x16x128xf32, #tpu.memory_space<vmem>>, %arg8: memref<1x8x8xf32, #tpu.memory_space<vmem>>) attributes {dimension_semantics = [#tpu.dimension_semantics<parallel>], iteration_bounds = array<i64: 2>, scalar_prefetch = 0 : i64, scratch_operands = 0 : i64, tpu.core_type = #tpu.core_type<tc>, window_params = [{transform_indices = @transform_0, window_bounds = array<i64: 1, 8, 128>}, {transform_indices = @transform_1, window_bounds = array<i64: 1, 8, 128>}, {pipeline_mode = #tpu.pipeline_mode<synchronous>, transform_indices = @transform_2, window_bounds = array<i64: 128, 128>}, {pipeline_mode = #tpu.pipeline_mode<synchronous>, transform_indices = @transform_3, window_bounds = array<i64: 1, 128>}, {pipeline_mode = #tpu.pipeline_mode<synchronous>, transform_indices = @transform_4, window_bounds = array<i64: 1, 128>}, {pipeline_mode = #tpu.pipeline_mode<synchronous>, transform_indices = @transform_5, window_bounds = array<i64: 1, 1>}, {transform_indices = @transform_6, window_bounds = array<i64: 1, 16, 128>}, {transform_indices = @transform_7, window_bounds = array<i64: 1, 8, 8>}]} {
    %c0 = arith.constant 0 : index
    %c0_0 = arith.constant 0 : index
    %c0_1 = arith.constant 0 : index
    %0 = vector.load %arg1[%c0, %c0_0, %c0_1] : memref<1x8x128xf32, #tpu.memory_space<vmem>>, vector<1x8x128xf32>
    %1 = vector.shape_cast %0 : vector<1x8x128xf32> to vector<8x128xf32>
    %c0_2 = arith.constant 0 : index
    %c0_3 = arith.constant 0 : index
    %c0_4 = arith.constant 0 : index
    %2 = vector.load %arg2[%c0_2, %c0_3, %c0_4] : memref<1x8x128xf32, #tpu.memory_space<vmem>>, vector<1x8x128xf32>
    %3 = vector.shape_cast %2 : vector<1x8x128xf32> to vector<8x128xf32>
    %c0_5 = arith.constant 0 : index
    %c0_6 = arith.constant 0 : index
    %4 = vector.load %arg3[%c0_5, %c0_6] : memref<128x128xbf16, #tpu.memory_space<vmem>>, vector<128x128xbf16>
    %c0_7 = arith.constant 0 : index
    %c0_8 = arith.constant 0 : index
    %5 = vector.load %arg4[%c0_7, %c0_8] : memref<1x128xf32, #tpu.memory_space<vmem>>, vector<1x128xf32>
    %c0_9 = arith.constant 0 : index
    %c0_10 = arith.constant 0 : index
    %6 = vector.load %arg5[%c0_9, %c0_10] : memref<1x128xf32, #tpu.memory_space<vmem>>, vector<1x128xf32>
    %c0_11 = arith.constant 0 : index
    %c0_12 = arith.constant 0 : index
    %7 = vector.load %arg6[%c0_11, %c0_12] : memref<1x1xf32, #tpu.memory_space<vmem>>, vector<1x1xf32>
    %8 = vector.broadcast %6 : vector<1x128xf32> to vector<8x128xf32>
    %9 = arith.mulf %1, %8 : vector<8x128xf32>
    %cst = arith.constant dense<0.000000e+00> : vector<8xf32>
    %10 = vector.multi_reduction <add>, %9, %cst [1] : vector<8x128xf32> to vector<8xf32>
    %11 = vector.shape_cast %10 : vector<8xf32> to vector<8x1xf32>
    %12 = vector.broadcast %7 : vector<1x1xf32> to vector<8x1xf32>
    %13 = arith.addf %11, %12 : vector<8x1xf32>
    %14 = vector.broadcast %6 : vector<1x128xf32> to vector<8x128xf32>
    %15 = arith.mulf %3, %14 : vector<8x128xf32>
    %cst_13 = arith.constant dense<0.000000e+00> : vector<8xf32>
    %16 = vector.multi_reduction <add>, %15, %cst_13 [1] : vector<8x128xf32> to vector<8xf32>
    %17 = vector.shape_cast %16 : vector<8xf32> to vector<8x1xf32>
    %18 = vector.broadcast %7 : vector<1x1xf32> to vector<8x1xf32>
    %19 = arith.addf %17, %18 : vector<8x1xf32>
    %20 = arith.truncf %1 : vector<8x128xf32> to vector<8x128xbf16>
    %cst_14 = arith.constant dense<0.000000e+00> : vector<8x128xf32>
    %21 = tpu.matmul %20, %4, %cst_14 {dimension_numbers = #tpu.dot_dimension_numbers<[1], [0], [0], [1], [0, 0, 1, 1], [], []>} : vector<8x128xbf16>, vector<128x128xbf16>, vector<8x128xf32> -> vector<8x128xf32>
    %22 = vector.broadcast %5 : vector<1x128xf32> to vector<8x128xf32>
    %23 = arith.addf %21, %22 : vector<8x128xf32>
    %24 = arith.truncf %3 : vector<8x128xf32> to vector<8x128xbf16>
    %cst_15 = arith.constant dense<0.000000e+00> : vector<8x128xf32>
    %25 = tpu.matmul %24, %4, %cst_15 {dimension_numbers = #tpu.dot_dimension_numbers<[1], [0], [0], [1], [0, 0, 1, 1], [], []>} : vector<8x128xbf16>, vector<128x128xbf16>, vector<8x128xf32> -> vector<8x128xf32>
    %26 = vector.broadcast %5 : vector<1x128xf32> to vector<8x128xf32>
    %27 = arith.addf %25, %26 : vector<8x128xf32>
    %28 = arith.truncf %23 : vector<8x128xf32> to vector<8x128xbf16>
    %29 = arith.truncf %27 : vector<8x128xf32> to vector<8x128xbf16>
    %cst_16 = arith.constant dense<0.000000e+00> : vector<8x8xf32>
    %30 = tpu.matmul %28, %29, %cst_16 {dimension_numbers = #tpu.dot_dimension_numbers<[1], [1], [0], [0], [0, 0, 1, 0], [], []>} : vector<8x128xbf16>, vector<8x128xbf16>, vector<8x8xf32> -> vector<8x8xf32>
    %c0_17 = arith.constant 0 : index
    %c0_18 = arith.constant 0 : index
    %c0_19 = arith.constant 0 : index
    %31 = vector.load %arg8[%c0_17, %c0_18, %c0_19] : memref<1x8x8xf32, #tpu.memory_space<vmem>>, vector<1x8x8xf32>
    %32 = vector.shape_cast %31 : vector<1x8x8xf32> to vector<8x8xf32>
    %33 = vector.shape_cast %30 : vector<8x8xf32> to vector<1x8x8xf32>
    tpu.vector_store %arg8[%c0_17, %c0_18, %c0_19], %33 {strides = array<i32>} : memref<1x8x8xf32, #tpu.memory_space<vmem>>, vector<1x8x8xf32>,
    %cst_20 = arith.constant dense<0xFF800000> : vector<8xf32>
    %34 = vector.multi_reduction <maximumf>, %30, %cst_20 [1] : vector<8x8xf32> to vector<8xf32>
    %35 = vector.shape_cast %34 : vector<8xf32> to vector<8x1xf32>
    %36 = vector.broadcast %35 : vector<8x1xf32> to vector<8x8xf32>
    %37 = arith.subf %30, %36 : vector<8x8xf32>
    %38 = math.exp %37 : vector<8x8xf32>
    %cst_21 = arith.constant dense<0.000000e+00> : vector<8xf32>
    %39 = vector.multi_reduction <add>, %38, %cst_21 [1] : vector<8x8xf32> to vector<8xf32>
    %40 = vector.shape_cast %39 : vector<8xf32> to vector<8x1xf32>
    %41 = math.log %40 : vector<8x1xf32>
    %42 = arith.addf %35, %41 : vector<8x1xf32>
    %43 = vector.shape_cast %35 : vector<8x1xf32> to vector<1x8x1xf32>
    %cst_22 = arith.constant dense<0xFF800000> : vector<1xf32>
    %44 = vector.multi_reduction <maximumf>, %43, %cst_22 [1, 2] : vector<1x8x1xf32> to vector<1xf32>
    %45 = vector.shape_cast %44 : vector<1xf32> to vector<1x1x1xf32>
    %46 = vector.extract %45[0, 0, 0] : f32 from vector<1x1x1xf32>
    %47 = vector.broadcast %46 : f32 to vector<8x1xf32>
    %48 = arith.subf %35, %47 : vector<8x1xf32>
    %49 = math.exp %48 : vector<8x1xf32>
    %50 = tpu.transpose %49, [1, 0] : vector<8x1xf32> -> vector<1x8xf32>
    %cst_23 = arith.constant dense<0.000000e+00> : vector<1x8xf32>
    %51 = tpu.matmul %50, %38, %cst_23 {dimension_numbers = #tpu.dot_dimension_numbers<[1], [0], [0], [1], [0, 0, 1, 1], [], []>} : vector<1x8xf32>, vector<8x8xf32>, vector<1x8xf32> -> vector<1x8xf32>
    %cst_24 = arith.constant 1.17549435E-38 : f32
    %52 = vector.broadcast %cst_24 : f32 to vector<1x8xf32>
    %53 = arith.maximumf %51, %52 : vector<1x8xf32>
    %54 = math.log %53 : vector<1x8xf32>
    %55 = vector.broadcast %46 : f32 to vector<1x8xf32>
    %56 = arith.addf %55, %54 : vector<1x8xf32>
    %cst_25 = arith.constant 0.000000e+00 : f32
    %57 = vector.broadcast %cst_25 : f32 to vector<8x1xf32>
    %58 = arith.minimumf %13, %57 : vector<8x1xf32>
    %59 = math.absf %13 : vector<8x1xf32>
    %cst_26 = arith.constant 0.000000e+00 : f32
    %60 = vector.broadcast %cst_26 : f32 to vector<8x1xf32>
    %61 = arith.subf %60, %59 : vector<8x1xf32>
    %62 = math.exp %61 : vector<8x1xf32>
    %cst_27 = arith.constant 1.000000e+00 : f32
    %63 = vector.broadcast %cst_27 : f32 to vector<8x1xf32>
    %64 = arith.addf %63, %62 : vector<8x1xf32>
    %65 = math.log %64 : vector<8x1xf32>
    %66 = arith.subf %58, %65 : vector<8x1xf32>
    %cst_28 = arith.constant 0.000000e+00 : f32
    %67 = vector.broadcast %cst_28 : f32 to vector<8x1xf32>
    %68 = arith.minimumf %19, %67 : vector<8x1xf32>
    %69 = math.absf %19 : vector<8x1xf32>
    %cst_29 = arith.constant 0.000000e+00 : f32
    %70 = vector.broadcast %cst_29 : f32 to vector<8x1xf32>
    %71 = arith.subf %70, %69 : vector<8x1xf32>
    %72 = math.exp %71 : vector<8x1xf32>
    %cst_30 = arith.constant 1.000000e+00 : f32
    %73 = vector.broadcast %cst_30 : f32 to vector<8x1xf32>
    %74 = arith.addf %73, %72 : vector<8x1xf32>
    %75 = math.log %74 : vector<8x1xf32>
    %76 = arith.subf %68, %75 : vector<8x1xf32>
    %cst_31 = arith.constant 2.000000e+00 : f32
    %77 = vector.broadcast %cst_31 : f32 to vector<8x8xf32>
    %78 = arith.mulf %77, %30 : vector<8x8xf32>
    %79 = arith.subf %66, %42 : vector<8x1xf32>
    %80 = vector.broadcast %79 : vector<8x1xf32> to vector<8x8xf32>
    %81 = arith.addf %78, %80 : vector<8x8xf32>
    %82 = tpu.transpose %76, [1, 0] : vector<8x1xf32> -> vector<1x8xf32>
    %83 = arith.subf %82, %56 : vector<1x8xf32>
    %84 = vector.broadcast %83 : vector<1x8xf32> to vector<8x8xf32>
    %85 = arith.addf %81, %84 : vector<8x8xf32>
    %cst_32 = arith.constant 0.000000e+00 : f32
    %86 = vector.broadcast %cst_32 : f32 to vector<16x128xf32>
    %c0_33 = arith.constant 0 : index
    %c0_34 = arith.constant 0 : index
    %c0_35 = arith.constant 0 : index
    %87 = vector.load %arg7[%c0_33, %c0_34, %c0_35] : memref<1x16x128xf32, #tpu.memory_space<vmem>>, vector<1x16x128xf32>
    %88 = vector.shape_cast %87 : vector<1x16x128xf32> to vector<16x128xf32>
    %89 = vector.shape_cast %86 : vector<16x128xf32> to vector<1x16x128xf32>
    tpu.vector_store %arg7[%c0_33, %c0_34, %c0_35], %89 {strides = array<i32>} : memref<1x16x128xf32, #tpu.memory_space<vmem>>, vector<1x16x128xf32>,
    %c0_36 = arith.constant 0 : index
    %c0_37 = arith.constant 0 : index
    %c0_38 = arith.constant 0 : index
    %90 = vector.load %arg7[%c0_36, %c0_37, %c0_38] : memref<1x16x128xf32, #tpu.memory_space<vmem>>, vector<1x8x8xf32>
    %91 = vector.shape_cast %90 : vector<1x8x8xf32> to vector<8x8xf32>
    %92 = vector.shape_cast %85 : vector<8x8xf32> to vector<1x8x8xf32>
    tpu.vector_store %arg7[%c0_36, %c0_37, %c0_38], %92 {strides = array<i32>} : memref<1x16x128xf32, #tpu.memory_space<vmem>>, vector<1x8x8xf32>,
    %cst_39 = arith.constant 0.000000e+00 : f32
    %93 = vector.broadcast %cst_39 : f32 to vector<8x1xf32>
    %94 = arith.subf %93, %13 : vector<8x1xf32>
    %cst_40 = arith.constant 0.000000e+00 : f32
    %95 = vector.broadcast %cst_40 : f32 to vector<8x1xf32>
    %96 = arith.minimumf %94, %95 : vector<8x1xf32>
    %97 = math.absf %94 : vector<8x1xf32>
    %cst_41 = arith.constant 0.000000e+00 : f32
    %98 = vector.broadcast %cst_41 : f32 to vector<8x1xf32>
    %99 = arith.subf %98, %97 : vector<8x1xf32>
    %100 = math.exp %99 : vector<8x1xf32>
    %cst_42 = arith.constant 1.000000e+00 : f32
    %101 = vector.broadcast %cst_42 : f32 to vector<8x1xf32>
    %102 = arith.addf %101, %100 : vector<8x1xf32>
    %103 = math.log %102 : vector<8x1xf32>
    %104 = arith.subf %96, %103 : vector<8x1xf32>
    %c0_43 = arith.constant 0 : index
    %c0_44 = arith.constant 0 : index
    %c8 = arith.constant 8 : index
    %105 = vector.load %arg7[%c0_43, %c0_44, %c8] : memref<1x16x128xf32, #tpu.memory_space<vmem>>, vector<1x8x1xf32>
    %106 = vector.shape_cast %105 : vector<1x8x1xf32> to vector<8x1xf32>
    %107 = vector.shape_cast %104 : vector<8x1xf32> to vector<1x8x1xf32>
    tpu.vector_store %arg7[%c0_43, %c0_44, %c8], %107 {strides = array<i32>} : memref<1x16x128xf32, #tpu.memory_space<vmem>>, vector<1x8x1xf32>,
    %cst_45 = arith.constant 0.000000e+00 : f32
    %108 = vector.broadcast %cst_45 : f32 to vector<8x1xf32>
    %109 = arith.subf %108, %19 : vector<8x1xf32>
    %cst_46 = arith.constant 0.000000e+00 : f32
    %110 = vector.broadcast %cst_46 : f32 to vector<8x1xf32>
    %111 = arith.minimumf %109, %110 : vector<8x1xf32>
    %112 = math.absf %109 : vector<8x1xf32>
    %cst_47 = arith.constant 0.000000e+00 : f32
    %113 = vector.broadcast %cst_47 : f32 to vector<8x1xf32>
    %114 = arith.subf %113, %112 : vector<8x1xf32>
    %115 = math.exp %114 : vector<8x1xf32>
    %cst_48 = arith.constant 1.000000e+00 : f32
    %116 = vector.broadcast %cst_48 : f32 to vector<8x1xf32>
    %117 = arith.addf %116, %115 : vector<8x1xf32>
    %118 = math.log %117 : vector<8x1xf32>
    %119 = arith.subf %111, %118 : vector<8x1xf32>
    %120 = tpu.transpose %119, [1, 0] : vector<8x1xf32> -> vector<1x8xf32>
    %c0_49 = arith.constant 0 : index
    %c8_50 = arith.constant 8 : index
    %c0_51 = arith.constant 0 : index
    %121 = vector.load %arg7[%c0_49, %c8_50, %c0_51] : memref<1x16x128xf32, #tpu.memory_space<vmem>>, vector<1x1x8xf32>
    %122 = vector.shape_cast %121 : vector<1x1x8xf32> to vector<1x8xf32>
    %123 = vector.shape_cast %120 : vector<1x8xf32> to vector<1x1x8xf32>
    tpu.vector_store %arg7[%c0_49, %c8_50, %c0_51], %123 {strides = array<i32>} : memref<1x16x128xf32, #tpu.memory_space<vmem>>, vector<1x1x8xf32>,
    return
  }
  func.func @transform_0(%arg0: i32) -> (i32, i32, i32) {
    %c0_i32 = arith.constant 0 : i32
    %c0_i32_0 = arith.constant 0 : i32
    %c0_i32_1 = arith.constant 0 : i32
    return %arg0, %c0_i32, %c0_i32_0 : i32, i32, i32
  }
  func.func @transform_1(%arg0: i32) -> (i32, i32, i32) {
    %c0_i32 = arith.constant 0 : i32
    %c0_i32_0 = arith.constant 0 : i32
    %c0_i32_1 = arith.constant 0 : i32
    return %arg0, %c0_i32, %c0_i32_0 : i32, i32, i32
  }
  func.func @transform_2(%arg0: i32) -> (i32, i32) {
    %c0_i32 = arith.constant 0 : i32
    %c0_i32_0 = arith.constant 0 : i32
    %c0_i32_1 = arith.constant 0 : i32
    return %c0_i32, %c0_i32_0 : i32, i32
  }
  func.func @transform_3(%arg0: i32) -> (i32, i32) {
    %c0_i32 = arith.constant 0 : i32
    %c0_i32_0 = arith.constant 0 : i32
    %c0_i32_1 = arith.constant 0 : i32
    return %c0_i32, %c0_i32_0 : i32, i32
  }
  func.func @transform_4(%arg0: i32) -> (i32, i32) {
    %c0_i32 = arith.constant 0 : i32
    %c0_i32_0 = arith.constant 0 : i32
    %c0_i32_1 = arith.constant 0 : i32
    return %c0_i32, %c0_i32_0 : i32, i32
  }
  func.func @transform_5(%arg0: i32) -> (i32, i32) {
    %c0_i32 = arith.constant 0 : i32
    %c0_i32_0 = arith.constant 0 : i32
    %c0_i32_1 = arith.constant 0 : i32
    return %c0_i32, %c0_i32_0 : i32, i32
  }
  func.func @transform_6(%arg0: i32) -> (i32, i32, i32) {
    %c0_i32 = arith.constant 0 : i32
    %c0_i32_0 = arith.constant 0 : i32
    %c0_i32_1 = arith.constant 0 : i32
    return %arg0, %c0_i32, %c0_i32_0 : i32, i32, i32
  }
  func.func @transform_7(%arg0: i32) -> (i32, i32, i32) {
    %c0_i32 = arith.constant 0 : i32
    %c0_i32_0 = arith.constant 0 : i32
    %c0_i32_1 = arith.constant 0 : i32
    return %arg0, %c0_i32, %c0_i32_0 : i32, i32, i32
  }
}

</mosaic_0001>

<llo_original>
// kernel: tpu_custom_call.1
$region0: #{tpu_custom_call.1}
  #allocation0 [shape = 'u32[]', space=smem, size = 0x4, offset = 0x4, fixed_abs, tag = 'smem constant byte address 0x4 - core index']
  #allocation1 [shape = 'u32[144,128]{1,0:T(1,128)}', space=vmem, size = 0x12000, scoped, tag = 'internal scratch']
  #allocation2 [shape = 'f32[1,1]{1,0:T(1,128)S(1)}', space=vmem, size = 0x200, scoped, tag = 'scoped memory for tpu_custom_call.1']
  %s0 = inlined_call_operand.hbm [shape: f32[2,8,128], index: 0, kind: input, shape index: {}]
  %s1 = inlined_call_operand.hbm [shape: f32[2,8,128], index: 1, kind: input, shape index: {}]
  %s2 = inlined_call_operand.hbm [shape: bf16[128,128], index: 2, kind: input, shape index: {}]
  %s3 = inlined_call_operand.vmem [shape: f32[1,128], index: 3, kind: input, shape index: {}]
  %s4 = inlined_call_operand.vmem [shape: f32[1,128], index: 4, kind: input, shape index: {}]
  %s5 = inlined_call_operand.<no memory space> [shape: f32[1,1], index: 5, kind: input, shape index: {}]
  %s6 = inlined_call_operand.hbm [shape: f32[2,16,128], index: 6, kind: output, shape index: {0}]
  %s7 = inlined_call_operand.hbm [shape: f32[2,8,8], index: 7, kind: output, shape index: {1}]
  %8 = xla_tuple %s6, %s7
  %s9 = sld [smem:[#allocation0]]
  $region77: #{tpu_custom_call.1} parent=0
    _
  %s11 = ssub.s32 1, %s9
  %s12 = scalar_select 0, %s11, %s9
  %v13 = vstv %s5
  %14 = vst [vmem:[#allocation2] sm:$0x1] %v13
  $region1: #{tpu_custom_call.1} parent=0
    #allocation3 [shape = 'u8[8192]{0}', space=vmem, size = 0x2000, scoped, tag = 'input window, operand 0']
    #allocation4 [shape = 's32[2]{0}', space=sflag, size = 0x8, scoped, tag = 'scoped memory for tpu_custom_call.1']
    #allocation5 [shape = 's32[2]{0}', space=sflag, size = 0x8, scoped, tag = 'scoped memory for tpu_custom_call.1']
    #allocation6 [shape = 'u8[8192]{0}', space=vmem, size = 0x2000, scoped, tag = 'input window, operand 1']
    #allocation7 [shape = 's32[2]{0}', space=sflag, size = 0x8, scoped, tag = 'scoped memory for tpu_custom_call.1']
    #allocation8 [shape = 'u8[32768]{0}', space=vmem, size = 0x8000, scoped, tag = 'input window, operand 2, single buffered']
    #allocation9 [shape = 'u8[16384]{0}', space=vmem, size = 0x4000, scoped, tag = 'output window, operand 0']
    #allocation10 [shape = 'u8[8192]{0}', space=vmem, size = 0x2000, scoped, tag = 'output window, operand 1']
    #allocation11 [shape = 's32[2]{0}', space=sflag, size = 0x8, scoped, tag = 'scoped memory for tpu_custom_call.1']
    %15 = vsyncpa [#allocation4], 0
    %s16 = scalar_lea.sflag [#allocation4], 1
    %17 = vsyncpa %s16, 0
    %18 = vsyncpa [#allocation7], 0
    %s19 = scalar_lea.sflag [#allocation7], 1
    %20 = vsyncpa %s19, 0
    %21 = vsyncpa [#allocation5], 0
    %s22 = scalar_lea.sflag [#allocation5], 1
    %23 = vsyncpa %s22, 0
    %24 = vsyncpa [#allocation11], 0
    %s25 = scalar_lea.sflag [#allocation11], 1
    %26 = vsyncpa %s25, 0
    loop: start=0, step=1, limit=4
    $region2: #{tpu_custom_call.1} parent=1 // loop_pre_header
      _
    $region3: #{tpu_custom_call.1} parent=1 // loop_header
      %s28 = sphi 0, %s32
      %p29 = scmp.ge.s32.totalorder %s28, 4
      %s38 = sphi 0, %s40
      %s41 = sphi 0, %s38
      %s42 = sphi 0, %s41
      %s58 = sphi 0, %s42
      %s64 = sphi 0, %s66
      %s67 = sphi 0, %s64
      %s68 = sphi 0, %s67
      %s84 = sphi 0, %s68
      %s88 = sphi 0, %s88
      %s90 = sphi 0, %s88
      %s91 = sphi 0, %s90
      %s105 = sphi 0, %s91
      %s109 = sphi 0, %s109
      %s111 = sphi 0, %s109
      %s112 = sphi 0, %s111
      %s126 = sphi 0, %s112
      %s130 = sphi 0, %s130
      %s132 = sphi 0, %s130
      %s133 = sphi 0, %s132
      %s147 = sphi 0, %s133
      %s151 = sphi 0, %s151
      %s153 = sphi 0, %s151
      %s154 = sphi 0, %s153
      %s168 = sphi 0, %s154
      %s174 = sphi 0, %s176
      %s177 = sphi 0, %s174
      %s178 = sphi 0, %s177
      %s194 = sphi 0, %s178
      %s200 = sphi 0, %s202
      %s203 = sphi 0, %s200
      %s204 = sphi 0, %s203
      %s220 = sphi 0, %s204
    $region4: #{tpu_custom_call.1} parent=1 // loop_header_branch
      %31 = sbr.rel (%p29) target = $region8
    $region5: #{tpu_custom_call.1} parent=1 // loop_body
      %s33 = ssub.s32 %s28, 1
      %s34 = ssub.s32 %s28, 2
      %s35 = sadd.s32 %s28, 1
      %s36 = ssub.s32 %s28, %s35
      %p37 = scmp.eq.s32.totalorder %s36, 0
      %s39 = sadd.s32 %s38, 1
      %s40 = scalar_select %p37, %s38, %s39
      %p43 = pneg %p37
      %p44 = scmp.eq.s32.totalorder %s28, 1
      %p45 = por %p43, %p44
      %p46 = scmp.ne.s32.totalorder %s38, %s41
      %p47 = scmp.eq.s32.totalorder %s28, 0
      %p48 = por %p46, %p47
      %p49 = scmp.ne.s32.totalorder %s38, %s41
      %p50 = scmp.eq.s32.totalorder %s33, 1
      %p51 = por %p49, %p50
      %p52 = scmp.ne.s32.totalorder %s41, %s42
      %p53 = scmp.eq.s32.totalorder %s33, 0
      %p54 = por %p52, %p53
      %p55 = scmp.ne.s32.totalorder %s41, %s42
      %p56 = scmp.eq.s32.totalorder %s34, 1
      %p57 = por %p55, %p56
      %p59 = scmp.ne.s32.totalorder %s42, %s58
      %p60 = scmp.eq.s32.totalorder %s34, 0
      %p61 = por %p59, %p60
      %s62 = ssub.s32 %s28, %s35
      %p63 = scmp.eq.s32.totalorder %s62, 0
      %s65 = sadd.s32 %s64, 1
      %s66 = scalar_select %p63, %s64, %s65
      %p69 = pneg %p63
      %p70 = scmp.eq.s32.totalorder %s28, 1
      %p71 = por %p69, %p70
      %p72 = scmp.ne.s32.totalorder %s64, %s67
      %p73 = scmp.eq.s32.totalorder %s28, 0
      %p74 = por %p72, %p73
      %p75 = scmp.ne.s32.totalorder %s64, %s67
      %p76 = scmp.eq.s32.totalorder %s33, 1
      %p77 = por %p75, %p76
      %p78 = scmp.ne.s32.totalorder %s67, %s68
      %p79 = scmp.eq.s32.totalorder %s33, 0
      %p80 = por %p78, %p79
      %p81 = scmp.ne.s32.totalorder %s67, %s68
      %p82 = scmp.eq.s32.totalorder %s34, 1
      %p83 = por %p81, %p82
      %p85 = scmp.ne.s32.totalorder %s68, %s84
      %p86 = scmp.eq.s32.totalorder %s34, 0
      %p87 = por %p85, %p86
      %s89 = sadd.s32 %s88, 1
      %p92 = scmp.eq.s32.totalorder %s28, 1
      %p93 = scmp.ne.s32.totalorder %s88, %s90
      %p94 = scmp.eq.s32.totalorder %s28, 0
      %p95 = por %p93, %p94
      %p96 = scmp.ne.s32.totalorder %s88, %s90
      %p97 = scmp.eq.s32.totalorder %s33, 1
      %p98 = por %p96, %p97
      %p99 = scmp.ne.s32.totalorder %s90, %s91
      %p100 = scmp.eq.s32.totalorder %s33, 0
      %p101 = por %p99, %p100
      %p102 = scmp.ne.s32.totalorder %s90, %s91
      %p103 = scmp.eq.s32.totalorder %s34, 1
      %p104 = por %p102, %p103
      %p106 = scmp.ne.s32.totalorder %s91, %s105
      %p107 = scmp.eq.s32.totalorder %s34, 0
      %p108 = por %p106, %p107
      %s110 = sadd.s32 %s109, 1
      %p113 = scmp.eq.s32.totalorder %s28, 1
      %p114 = scmp.ne.s32.totalorder %s109, %s111
      %p115 = scmp.eq.s32.totalorder %s28, 0
      %p116 = por %p114, %p115
      %p117 = scmp.ne.s32.totalorder %s109, %s111
      %p118 = scmp.eq.s32.totalorder %s33, 1
      %p119 = por %p117, %p118
      %p120 = scmp.ne.s32.totalorder %s111, %s112
      %p121 = scmp.eq.s32.totalorder %s33, 0
      %p122 = por %p120, %p121
      %p123 = scmp.ne.s32.totalorder %s111, %s112
      %p124 = scmp.eq.s32.totalorder %s34, 1
      %p125 = por %p123, %p124
      %p127 = scmp.ne.s32.totalorder %s112, %s126
      %p128 = scmp.eq.s32.totalorder %s34, 0
      %p129 = por %p127, %p128
      %s131 = sadd.s32 %s130, 1
      %p134 = scmp.eq.s32.totalorder %s28, 1
      %p135 = scmp.ne.s32.totalorder %s130, %s132
      %p136 = scmp.eq.s32.totalorder %s28, 0
      %p137 = por %p135, %p136
      %p138 = scmp.ne.s32.totalorder %s130, %s132
      %p139 = scmp.eq.s32.totalorder %s33, 1
      %p140 = por %p138, %p139
      %p141 = scmp.ne.s32.totalorder %s132, %s133
      %p142 = scmp.eq.s32.totalorder %s33, 0
      %p143 = por %p141, %p142
      %p144 = scmp.ne.s32.totalorder %s132, %s133
      %p145 = scmp.eq.s32.totalorder %s34, 1
      %p146 = por %p144, %p145
      %p148 = scmp.ne.s32.totalorder %s133, %s147
      %p149 = scmp.eq.s32.totalorder %s34, 0
      %p150 = por %p148, %p149
      %s152 = sadd.s32 %s151, 1
      %p155 = scmp.eq.s32.totalorder %s28, 1
      %p156 = scmp.ne.s32.totalorder %s151, %s153
      %p157 = scmp.eq.s32.totalorder %s28, 0
      %p158 = por %p156, %p157
      %p159 = scmp.ne.s32.totalorder %s151, %s153
      %p160 = scmp.eq.s32.totalorder %s33, 1
      %p161 = por %p159, %p160
      %p162 = scmp.ne.s32.totalorder %s153, %s154
      %p163 = scmp.eq.s32.totalorder %s33, 0
      %p164 = por %p162, %p163
      %p165 = scmp.ne.s32.totalorder %s153, %s154
      %p166 = scmp.eq.s32.totalorder %s34, 1
      %p167 = por %p165, %p166
      %p169 = scmp.ne.s32.totalorder %s154, %s168
      %p170 = scmp.eq.s32.totalorder %s34, 0
      %p171 = por %p169, %p170
      %s172 = ssub.s32 %s28, %s35
      %p173 = scmp.eq.s32.totalorder %s172, 0
      %s175 = sadd.s32 %s174, 1
      %s176 = scalar_select %p173, %s174, %s175
      %p179 = pneg %p173
      %p180 = scmp.eq.s32.totalorder %s28, 1
      %p181 = por %p179, %p180
      %p182 = scmp.ne.s32.totalorder %s174, %s177
      %p183 = scmp.eq.s32.totalorder %s28, 0
      %p184 = por %p182, %p183
      %p185 = scmp.ne.s32.totalorder %s174, %s177
      %p186 = scmp.eq.s32.totalorder %s33, 1
      %p187 = por %p185, %p186
      %p188 = scmp.ne.s32.totalorder %s177, %s178
      %p189 = scmp.eq.s32.totalorder %s33, 0
      %p190 = por %p188, %p189
      %p191 = scmp.ne.s32.totalorder %s177, %s178
      %p192 = scmp.eq.s32.totalorder %s34, 1
      %p193 = por %p191, %p192
      %p195 = scmp.ne.s32.totalorder %s178, %s194
      %p196 = scmp.eq.s32.totalorder %s34, 0
      %p197 = por %p195, %p196
      %s198 = ssub.s32 %s28, %s35
      %p199 = scmp.eq.s32.totalorder %s198, 0
      %s201 = sadd.s32 %s200, 1
      %s202 = scalar_select %p199, %s200, %s201
      %p205 = pneg %p199
      %p206 = scmp.eq.s32.totalorder %s28, 1
      %p207 = por %p205, %p206
      %p208 = scmp.ne.s32.totalorder %s200, %s203
      %p209 = scmp.eq.s32.totalorder %s28, 0
      %p210 = por %p208, %p209
      %p211 = scmp.ne.s32.totalorder %s200, %s203
      %p212 = scmp.eq.s32.totalorder %s33, 1
      %p213 = por %p211, %p212
      %p214 = scmp.ne.s32.totalorder %s203, %s204
      %p215 = scmp.eq.s32.totalorder %s33, 0
      %p216 = por %p214, %p215
      %p217 = scmp.ne.s32.totalorder %s203, %s204
      %p218 = scmp.eq.s32.totalorder %s34, 1
      %p219 = por %p217, %p218
      %p221 = scmp.ne.s32.totalorder %s204, %s220
      %p222 = scmp.eq.s32.totalorder %s34, 0
      %p223 = por %p221, %p222
      %p224 = scmp.le.s32.totalorder 1, %s28
      %p225 = scmp.lt.s32.totalorder %s28, 3
      %p226 = pnand %p224, %p225
      %p227 = pneg %p226
      // Predicated region
      $region9: #{tpu_custom_call.1} parent=5 // pred_check
        _
      $region10: #{tpu_custom_call.1} parent=5 // pred_check_branch
        %229 = sbr.rel (%p226) target = $region12
      $region11: #{tpu_custom_call.1} parent=5 // pred_region
        %s230 = ssub.s32 %s28, 1
        // Predicated region
        $region13: #{tpu_custom_call.1} parent=11 // pred_check
          %p231 = pneg %p101
        $region14: #{tpu_custom_call.1} parent=11 // pred_check_branch
          %233 = sbr.rel (%p231) target = $region16
        $region15: #{tpu_custom_call.1} parent=11 // pred_region
          %s235 = ssub.s32 1024, 1024
          %236 = vsyncadd [#allocation7], %s235
          %s237 = sshll.u32 [#allocation8], 4
          %s238 = int_to_ptr.vmem [resolvable:$true] %s237
          %243 = dma.hbm_to_vmem [thread:$0]  %s2, 1024, %s238, [#allocation7], 64, 64, 4
        $region16: #{tpu_custom_call.1} parent=11 // pred_fallthru
          _
        // Predicated region
        $region17: #{tpu_custom_call.1} parent=11 // pred_check
          %p244 = pneg %p122
        $region18: #{tpu_custom_call.1} parent=11 // pred_check_branch
          %246 = sbr.rel (%p244) target = $region20
        $region19: #{tpu_custom_call.1} parent=11 // pred_region
          _
        $region20: #{tpu_custom_call.1} parent=11 // pred_fallthru
          _
        // Predicated region
        $region21: #{tpu_custom_call.1} parent=11 // pred_check
          %p247 = pneg %p143
        $region22: #{tpu_custom_call.1} parent=11 // pred_check_branch
          %249 = sbr.rel (%p247) target = $region24
        $region23: #{tpu_custom_call.1} parent=11 // pred_region
          _
        $region24: #{tpu_custom_call.1} parent=11 // pred_fallthru
          _
        // Predicated region
        $region25: #{tpu_custom_call.1} parent=11 // pred_check
          %p250 = pneg %p164
        $region26: #{tpu_custom_call.1} parent=11 // pred_check_branch
          %252 = sbr.rel (%p250) target = $region28
        $region27: #{tpu_custom_call.1} parent=11 // pred_region
          _
        $region28: #{tpu_custom_call.1} parent=11 // pred_fallthru
          _
      $region12: #{tpu_custom_call.1} parent=5 // pred_fallthru
        _
      %p253 = scmp.lt.s32.totalorder %s28, 2
      // Predicated region
      $region29: #{tpu_custom_call.1} parent=5 // pred_check
        %p254 = pneg %p253
      $region30: #{tpu_custom_call.1} parent=5 // pred_check_branch
        %256 = sbr.rel (%p254) target = $region32
      $region31: #{tpu_custom_call.1} parent=5 // pred_region
        // Predicated region
        $region33: #{tpu_custom_call.1} parent=31 // pred_check
          %p257 = pneg %p48
        $region34: #{tpu_custom_call.1} parent=31 // pred_check_branch
          %259 = sbr.rel (%p257) target = $region36
        $region35: #{tpu_custom_call.1} parent=31 // pred_region
          %s260 = sand.u32 %s38, 1
          %s261 = scalar_lea.sflag [#allocation4], %s260
          %s262 = sand.u32 %s38, 1
          %s263 = smul.addr %s262, 8
          %s264 = scalar_lea.vmem [#allocation3], %s263
          %s266 = ssub.s32 128, 128
          %267 = vsyncadd %s261, %s266
          %s268 = smul.addr %s28, 128
          %s269 = scalar_lea.hbm %s0, %s268
          %s271 = sshll.u32 %s264, 4
          %s272 = int_to_ptr.vmem [resolvable:$true] %s271
          %274 = dma.hbm_to_vmem [thread:$0]  %s269, 128, %s272, %s261
        $region36: #{tpu_custom_call.1} parent=31 // pred_fallthru
          _
        // Predicated region
        $region37: #{tpu_custom_call.1} parent=31 // pred_check
          %p275 = pneg %p74
        $region38: #{tpu_custom_call.1} parent=31 // pred_check_branch
          %277 = sbr.rel (%p275) target = $region40
        $region39: #{tpu_custom_call.1} parent=31 // pred_region
          %s278 = sand.u32 %s28, 1
          %s279 = scalar_lea.sflag [#allocation7], %s278
          %s280 = sand.u32 %s64, 1
          %s281 = smul.addr %s280, 8
          %s282 = scalar_lea.vmem [#allocation6], %s281
          %s284 = ssub.s32 128, 128
          %285 = vsyncadd %s279, %s284
          %s286 = smul.addr %s28, 128
          %s287 = scalar_lea.hbm %s1, %s286
          %s289 = sshll.u32 %s282, 4
          %s290 = int_to_ptr.vmem [resolvable:$true] %s289
          %292 = dma.hbm_to_vmem [thread:$0]  %s287, 128, %s290, %s279
        $region40: #{tpu_custom_call.1} parent=31 // pred_fallthru
          _
      $region32: #{tpu_custom_call.1} parent=5 // pred_fallthru
        _
      %p293 = scmp.le.s32.totalorder 1, %s28
      %p294 = scmp.lt.s32.totalorder %s28, 3
      %p295 = pnand %p293, %p294
      %p296 = pneg %p295
      // Predicated region
      $region41: #{tpu_custom_call.1} parent=5 // pred_check
        _
      $region42: #{tpu_custom_call.1} parent=5 // pred_check_branch
        %298 = sbr.rel (%p295) target = $region44
      $region43: #{tpu_custom_call.1} parent=5 // pred_region
        %s299 = ssub.s32 %s28, 1
        %s300 = sand.u32 %s41, 1
        %s301 = scalar_lea.sflag [#allocation4], %s300
        %s302 = sand.u32 %s41, 1
        %s303 = smul.addr %s302, 8
        %s304 = scalar_lea.vmem [#allocation3], %s303
        // Predicated region
        $region45: #{tpu_custom_call.1} parent=43 // pred_check
          %p305 = pneg %p54
        $region46: #{tpu_custom_call.1} parent=43 // pred_check_branch
          %307 = sbr.rel (%p305) target = $region48
        $region47: #{tpu_custom_call.1} parent=43 // pred_region
          %308 = dma.done %s301, 128
        $region48: #{tpu_custom_call.1} parent=43 // pred_fallthru
          _
        %s309 = sand.u32 %s33, 1
        %s310 = scalar_lea.sflag [#allocation7], %s309
        %s311 = sand.u32 %s67, 1
        %s312 = smul.addr %s311, 8
        %s313 = scalar_lea.vmem [#allocation6], %s312
        // Predicated region
        $region49: #{tpu_custom_call.1} parent=43 // pred_check
          %p314 = pneg %p80
        $region50: #{tpu_custom_call.1} parent=43 // pred_check_branch
          %316 = sbr.rel (%p314) target = $region52
        $region51: #{tpu_custom_call.1} parent=43 // pred_region
          %317 = dma.done %s310, 128
        $region52: #{tpu_custom_call.1} parent=43 // pred_fallthru
          _
        // Predicated region
        $region53: #{tpu_custom_call.1} parent=43 // pred_check
          %p318 = pneg %p101
        $region54: #{tpu_custom_call.1} parent=43 // pred_check_branch
          %320 = sbr.rel (%p318) target = $region56
        $region55: #{tpu_custom_call.1} parent=43 // pred_region
          %321 = dma.done [#allocation7], 1024
        $region56: #{tpu_custom_call.1} parent=43 // pred_fallthru
          _
        %s322 = sand.u32 %s41, 1
        %s323 = scalar_lea.sflag [#allocation4], %s322
        %s324 = sand.u32 %s41, 1
        %s325 = smul.addr %s324, 8
        %s326 = scalar_lea.vmem [#allocation3], %s325
        %p327 = pneg %p54
        %p328 = pneg %p51
        %s329 = sand.u32 %s33, 1
        %s330 = scalar_lea.sflag [#allocation7], %s329
        %s331 = sand.u32 %s67, 1
        %s332 = smul.addr %s331, 8
        %s333 = scalar_lea.vmem [#allocation6], %s332
        %p334 = pneg %p80
        %p335 = pneg %p77
        %p336 = pneg %p101
        %p337 = pneg %p98
        %p338 = pneg %p122
        %p339 = pneg %p119
        %p340 = pneg %p143
        %p341 = pneg %p140
        %p342 = pneg %p164
        %p343 = pneg %p161
        %p344 = pneg %p190
        %p345 = pneg %p187
        %s346 = sand.u32 %s177, 1
        %s347 = scalar_lea.sflag [#allocation5], %s346
        %s348 = sand.u32 %s177, 1
        %s349 = smul.addr %s348, 16
        %s350 = scalar_lea.vmem [#allocation9], %s349
        %p351 = pneg %p216
        %p352 = pneg %p213
        %s353 = sand.u32 %s203, 1
        %s354 = scalar_lea.sflag [#allocation11], %s353
        %s355 = sand.u32 %s203, 1
        %s356 = smul.addr %s355, 8
        %s357 = scalar_lea.vmem [#allocation10], %s356
        %v359 = vld [vmem:[%s304] sm:$0xff]
        %v360 = vld [vmem:[%s313] sm:$0xff]
        %v361 = vld [vmem:[#allocation8] sm:$0xf]
        %v362 = vld [vmem:[#allocation8 + $0x4] sm:$0xf]
        %v363 = vld [vmem:[#allocation8 + $0x8] sm:$0xf]
        %v364 = vld [vmem:[#allocation8 + $0xc] sm:$0xf]
        %v365 = vld [vmem:[#allocation8 + $0x10] sm:$0xf]
        %v366 = vld [vmem:[#allocation8 + $0x14] sm:$0xf]
        %v367 = vld [vmem:[#allocation8 + $0x18] sm:$0xf]
        %v368 = vld [vmem:[#allocation8 + $0x1c] sm:$0xf]
        %v369 = vld [vmem:[#allocation8 + $0x20] sm:$0xf]
        %v370 = vld [vmem:[#allocation8 + $0x24] sm:$0xf]
        %v371 = vld [vmem:[#allocation8 + $0x28] sm:$0xf]
        %v372 = vld [vmem:[#allocation8 + $0x2c] sm:$0xf]
        %v373 = vld [vmem:[#allocation8 + $0x30] sm:$0xf]
        %v374 = vld [vmem:[#allocation8 + $0x34] sm:$0xf]
        %v375 = vld [vmem:[#allocation8 + $0x38] sm:$0xf]
        %v376 = vld [vmem:[#allocation8 + $0x3c] sm:$0xf]
        %v377 = vld [vmem:[%s3] sm:$0x1]
        %v378 = vld [vmem:[%s4] sm:$0x1]
        %v379 = vld [vmem:[#allocation2] sm:$0x1]
        %v381 = vlaneseq
        %v382 = vshrl.u32 %v381, 7
        %v383 = vsub.s32 0, %v382
        %v384 = vrot.slane %v378, %v383
        %v386 = vmul.f32 %v359, %v384
        %387 = vadd.xlane.f32.xlu0 %v386
        %v388 = vpop.xlane.xlu0 %387
        %v390 = vlaneseq
        %v391 = vshrl.u32 %v390, 7
        %v392 = vsub.s32 0, %v391
        %v393 = vrot.slane %v379, %v392
        %v395 = vadd.f32 %v388, %v393
        %v396 = vmul.f32 %v360, %v384
        %397 = vadd.xlane.f32.xlu0 %v396
        %v398 = vpop.xlane.xlu0 %397
        %v399 = vadd.f32 %v398, %v393
        %v400 = vpack.c.bf16 %v359, %v359
        %v402 = vlaneseq
        %v403 = vshrl.u32 %v402, 7
        %v404 = vsub.s32 0, %v403
        %v405 = vrot.slane %v377, %v404
        %v423 = vunpack.c.l.b16 %v361
        %v424 = vunpack.c.l.b16 %v362
        %v425 = vunpack.c.l.b16 %v363
        %v426 = vunpack.c.l.b16 %v364
        %v427 = vunpack.c.l.b16 %v365
        %v428 = vunpack.c.l.b16 %v366
        %v429 = vunpack.c.l.b16 %v367
        %v430 = vunpack.c.l.b16 %v368
        %v431 = vunpack.c.l.b16 %v369
        %v432 = vunpack.c.l.b16 %v370
        %v433 = vunpack.c.l.b16 %v371
        %v434 = vunpack.c.l.b16 %v372
        %v435 = vunpack.c.l.b16 %v373
        %v436 = vunpack.c.l.b16 %v374
        %v437 = vunpack.c.l.b16 %v375
        %v438 = vunpack.c.l.b16 %v376
        %v439 = vpack.c.b16 %v424, %v423
        %v440 = vpack.c.b16 %v426, %v425
        %v441 = vpack.c.b16 %v428, %v427
        %v442 = vpack.c.b16 %v430, %v429
        %v443 = vpack.c.b16 %v432, %v431
        %v444 = vpack.c.b16 %v434, %v433
        %v445 = vpack.c.b16 %v436, %v435
        %v446 = vpack.c.b16 %v438, %v437
        %455 = vmatprep.subr.bf16.mxu0 0
        %456 = vmatpush1.bf16.msra.mxu0 %v439
        %457 = vmatprep.subr.bf16.mxu0 0
        %458 = vmatpush1.bf16.msra.mxu0 %v440
        %459 = vmatprep.subr.bf16.mxu0 0
        %460 = vmatpush1.bf16.msra.mxu0 %v441
        %461 = vmatprep.subr.bf16.mxu0 0
        %462 = vmatpush1.bf16.msra.mxu0 %v442
        %463 = vmatprep.subr.bf16.mxu0 0
        %464 = vmatpush1.bf16.msra.mxu0 %v443
        %465 = vmatprep.subr.bf16.mxu0 0
        %466 = vmatpush1.bf16.msra.mxu0 %v444
        %467 = vmatprep.subr.bf16.mxu0 0
        %468 = vmatpush1.bf16.msra.mxu0 %v445
        %469 = vmatprep.subr.bf16.mxu0 0
        %470 = vmatpush1.bf16.msra.mxu0 %v446
        %471 = vmatprep.subr.bf16.mxu0 0
        %472 = vmatpush1.bf16.msra.mxu0 0
        %473 = vmatprep.subr.bf16.mxu0 0
        %474 = vmatpush1.bf16.msra.mxu0 0
        %475 = vmatprep.subr.bf16.mxu0 0
        %476 = vmatpush1.bf16.msra.mxu0 0
        %477 = vmatprep.subr.bf16.mxu0 0
        %478 = vmatpush1.bf16.msra.mxu0 0
        %479 = vmatprep.subr.bf16.mxu0 0
        %480 = vmatpush1.bf16.msra.mxu0 0
        %481 = vmatprep.subr.bf16.mxu0 0
        %482 = vmatpush1.bf16.msra.mxu0 0
        %483 = vmatprep.subr.bf16.mxu0 0
        %484 = vmatpush1.bf16.msra.mxu0 0
        %485 = vmatprep.subr.bf16.mxu0 0
        %486 = vmatpush1.bf16.msra.mxu0 0
        %487 = vmatprep.mubr.bf16.mxu0 0
        %488 = vmatmul.mubr.bf16.gmra.mrb[0].mxu0 %v400
        %v489 = vpop.f32.mrb[0].mxu0
        %v490 = vadd.f32 %v405, %v489
        %v491 = vpop.f32.mrb[0].mxu0
        %v492 = vpop.f32.mrb[0].mxu0
        %v493 = vpop.f32.mrb[0].mxu0
        %494 = vdwg.mxu0
        %v495 = vpack.c.bf16 %v360, %v360
        %496 = vmatprep.subr.bf16.mxu0 0
        %497 = vmatpush1.bf16.msra.mxu0 %v439
        %498 = vmatprep.subr.bf16.mxu0 0
        %499 = vmatpush1.bf16.msra.mxu0 %v440
        %500 = vmatprep.subr.bf16.mxu0 0
        %501 = vmatpush1.bf16.msra.mxu0 %v441
        %502 = vmatprep.subr.bf16.mxu0 0
        %503 = vmatpush1.bf16.msra.mxu0 %v442
        %504 = vmatprep.subr.bf16.mxu0 0
        %505 = vmatpush1.bf16.msra.mxu0 %v443
        %506 = vmatprep.subr.bf16.mxu0 0
        %507 = vmatpush1.bf16.msra.mxu0 %v444
        %508 = vmatprep.subr.bf16.mxu0 0
        %509 = vmatpush1.bf16.msra.mxu0 %v445
        %510 = vmatprep.subr.bf16.mxu0 0
        %511 = vmatpush1.bf16.msra.mxu0 %v446
        %512 = vmatprep.subr.bf16.mxu0 0
        %513 = vmatpush1.bf16.msra.mxu0 0
        %514 = vmatprep.subr.bf16.mxu0 0
        %515 = vmatpush1.bf16.msra.mxu0 0
        %516 = vmatprep.subr.bf16.mxu0 0
        %517 = vmatpush1.bf16.msra.mxu0 0
        %518 = vmatprep.subr.bf16.mxu0 0
        %519 = vmatpush1.bf16.msra.mxu0 0
        %520 = vmatprep.subr.bf16.mxu0 0
        %521 = vmatpush1.bf16.msra.mxu0 0
        %522 = vmatprep.subr.bf16.mxu0 0
        %523 = vmatpush1.bf16.msra.mxu0 0
        %524 = vmatprep.subr.bf16.mxu0 0
        %525 = vmatpush1.bf16.msra.mxu0 0
        %526 = vmatprep.subr.bf16.mxu0 0
        %527 = vmatpush1.bf16.msra.mxu0 0
        %528 = vmatprep.mubr.bf16.mxu0 0
        %529 = vmatmul.mubr.bf16.gmra.mrb[0].mxu0 %v495
        %v530 = vpop.f32.mrb[0].mxu0
        %v531 = vadd.f32 %v405, %v530
        %v532 = vpop.f32.mrb[0].mxu0
        %v533 = vpop.f32.mrb[0].mxu0
        %v534 = vpop.f32.mrb[0].mxu0
        %535 = vdwg.mxu0
        %v536 = vpack.c.bf16 %v490, %v490
        %v537 = vpack.c.bf16 %v531, %v531
        %538 = vmatprep.subr.bf16.mxu0 0
        %539 = vmatpush1.bf16.xpose.msra.mxu0 %v537
        %540 = vmatprep.subr.bf16.mxu0 0
        %541 = vmatpush1.bf16.xpose.msra.mxu0 0
        %542 = vmatprep.subr.bf16.mxu0 0
        %543 = vmatpush1.bf16.xpose.msra.mxu0 0
        %544 = vmatprep.subr.bf16.mxu0 0
        %545 = vmatpush1.bf16.xpose.msra.mxu0 0
        %546 = vmatprep.subr.bf16.mxu0 0
        %547 = vmatpush1.bf16.xpose.msra.mxu0 0
        %548 = vmatprep.subr.bf16.mxu0 0
        %549 = vmatpush1.bf16.xpose.msra.mxu0 0
        %550 = vmatprep.subr.bf16.mxu0 0
        %551 = vmatpush1.bf16.xpose.msra.mxu0 0
        %552 = vmatprep.subr.bf16.mxu0 0
        %553 = vmatpush1.bf16.xpose.msra.mxu0 0
        %554 = vmatprep.subr.bf16.mxu0 0
        %555 = vmatpush1.bf16.xpose.msra.mxu0 0
        %556 = vmatprep.subr.bf16.mxu0 0
        %557 = vmatpush1.bf16.xpose.msra.mxu0 0
        %558 = vmatprep.subr.bf16.mxu0 0
        %559 = vmatpush1.bf16.xpose.msra.mxu0 0
        %560 = vmatprep.subr.bf16.mxu0 0
        %561 = vmatpush1.bf16.xpose.msra.mxu0 0
        %562 = vmatprep.subr.bf16.mxu0 0
        %563 = vmatpush1.bf16.xpose.msra.mxu0 0
        %564 = vmatprep.subr.bf16.mxu0 0
        %565 = vmatpush1.bf16.xpose.msra.mxu0 0
        %566 = vmatprep.subr.bf16.mxu0 0
        %567 = vmatpush1.bf16.xpose.msra.mxu0 0
        %568 = vmatprep.subr.bf16.mxu0 0
        %569 = vmatpush1.bf16.xpose.msra.mxu0 0
        %570 = vmatprep.mubr.bf16.mxu0 0
        %571 = vmatmul.mubr.bf16.gmra.mrb[0].mxu0 %v536
        %v572 = vpop.f32.mrb[0].mxu0
        %v573 = vadd.f32 0.0, %v572
        %v574 = vpop.f32.mrb[0].mxu0
        %v575 = vpop.f32.mrb[0].mxu0
        %v576 = vpop.f32.mrb[0].mxu0
        %577 = vdwg.mxu0
        %vm578 = vcmask 64512
        %579 = vst.msk [vmem:[%s357] sm:$0xff] %vm578, %v573
        %v580 = vsel %vm578, %v573, -inf
        %581 = vmax.xlane.f32.xlu0 %v580
        %v582 = vpop.xlane.xlu0 %581
        %v583 = vsub.f32 %v573, %v582
        %v584 = vmul.f32 %v583, 1.442695
        %v585 = vpow.pop %v584
        %v586 = vsel %vm578, %v585, 0.0
        %587 = vadd.xlane.f32.xlu0 %v586
        %v588 = vpop.xlane.xlu0 %587
        %v589 = vlog2.pop %v588
        %v590 = vmul.f32 %v589, 0.6931472
        %v591 = vadd.f32 %v582, %v590
        %v592 = vrot.slane %v582, 4
        %v593 = vmax.f32 %v582, %v592
        %v594 = vrot.slane %v593, 2
        %v595 = vmax.f32 %v593, %v594
        %v596 = vrot.slane %v595, 1
        %v597 = vmax.f32 %v595, %v596
        %s598 = vtos %v597
        %v599 = vstv %s598
        %v600 = vsub.f32 %v582, %v599
        %v601 = vmul.f32 %v600, 1.442695
        %v602 = vpow.pop %v601
        %603 = vxpose.xlu0.b32.start [1/16] %v602, 128
        %604 = vxpose.xlu0.b32.cont [2/16] 0.0, 128
        %605 = vxpose.xlu0.b32.cont [3/16] 0.0, 128
        %606 = vxpose.xlu0.b32.cont [4/16] 0.0, 128
        %607 = vxpose.xlu0.b32.cont [5/16] 0.0, 128
        %608 = vxpose.xlu0.b32.cont [6/16] 0.0, 128
        %609 = vxpose.xlu0.b32.cont [7/16] 0.0, 128
        %610 = vxpose.xlu0.b32.cont [8/16] 0.0, 128
        %611 = vxpose.xlu0.b32.cont [9/16] 0.0, 128
        %612 = vxpose.xlu0.b32.cont [10/16] 0.0, 128
        %613 = vxpose.xlu0.b32.cont [11/16] 0.0, 128
        %614 = vxpose.xlu0.b32.cont [12/16] 0.0, 128
        %615 = vxpose.xlu0.b32.cont [13/16] 0.0, 128
        %616 = vxpose.xlu0.b32.cont [14/16] 0.0, 128
        %617 = vxpose.xlu0.b32.cont [15/16] 0.0, 128
        %618 = vxpose.xlu0.b32.end [16/16] 0.0, 128
        %v619 = vpop.trf.xlu0
        %v620 = vpop.trf.xlu0
        %v621 = vpop.trf.xlu0
        %v622 = vpop.trf.xlu0
        %v623 = vpop.trf.xlu0
        %v624 = vpop.trf.xlu0
        %v625 = vpop.trf.xlu0
        %v626 = vpop.trf.xlu0
        %v627 = vpop.trf.xlu0
        %v628 = vpop.trf.xlu0
        %v629 = vpop.trf.xlu0
        %v630 = vpop.trf.xlu0
        %v631 = vpop.trf.xlu0
        %v632 = vpop.trf.xlu0
        %v633 = vpop.trf.xlu0
        %v634 = vpop.trf.xlu0
        %v636 = vsel %vm578, %v619, 0
        %638 = vmatprep.subr.mxu0 0.0
        %639 = vmatpush1.msra.mxu0 %v585
        %640 = vmatprep.subr.mxu0 0.0
        %641 = vmatpush1.msra.mxu0 0.0
        %642 = vmatprep.subr.mxu0 0.0
        %643 = vmatpush1.msra.mxu0 0.0
        %644 = vmatprep.subr.mxu0 0.0
        %645 = vmatpush1.msra.mxu0 0.0
        %646 = vmatprep.subr.mxu0 0.0
        %647 = vmatpush1.msra.mxu0 0.0
        %648 = vmatprep.subr.mxu0 0.0
        %649 = vmatpush1.msra.mxu0 0.0
        %650 = vmatprep.subr.mxu0 0.0
        %651 = vmatpush1.msra.mxu0 0.0
        %652 = vmatprep.subr.mxu0 0.0
        %653 = vmatpush1.msra.mxu0 0.0
        %654 = vmatprep.subr.mxu0 0.0
        %655 = vmatpush1.msra.mxu0 0.0
        %656 = vmatprep.subr.mxu0 0.0
        %657 = vmatpush1.msra.mxu0 0.0
        %658 = vmatprep.subr.mxu0 0.0
        %659 = vmatpush1.msra.mxu0 0.0
        %660 = vmatprep.subr.mxu0 0.0
        %661 = vmatpush1.msra.mxu0 0.0
        %662 = vmatprep.subr.mxu0 0.0
        %663 = vmatpush1.msra.mxu0 0.0
        %664 = vmatprep.subr.mxu0 0.0
        %665 = vmatpush1.msra.mxu0 0.0
        %666 = vmatprep.subr.mxu0 0.0
        %667 = vmatpush1.msra.mxu0 0.0
        %668 = vmatprep.subr.mxu0 0.0
        %669 = vmatpush1.msra.mxu0 0.0
        %670 = vmatprep.subr.mxu0 0.0
        %671 = vmatpush1.msra.mxu0 0.0
        %672 = vmatprep.subr.mxu0 0.0
        %673 = vmatpush1.msra.mxu0 0.0
        %674 = vmatprep.subr.mxu0 0.0
        %675 = vmatpush1.msra.mxu0 0.0
        %676 = vmatprep.subr.mxu0 0.0
        %677 = vmatpush1.msra.mxu0 0.0
        %678 = vmatprep.subr.mxu0 0.0
        %679 = vmatpush1.msra.mxu0 0.0
        %680 = vmatprep.subr.mxu0 0.0
        %681 = vmatpush1.msra.mxu0 0.0
        %682 = vmatprep.subr.mxu0 0.0
        %683 = vmatpush1.msra.mxu0 0.0
        %684 = vmatprep.subr.mxu0 0.0
        %685 = vmatpush1.msra.mxu0 0.0
        %686 = vmatprep.subr.mxu0 0.0
        %687 = vmatpush1.msra.mxu0 0.0
        %688 = vmatprep.subr.mxu0 0.0
        %689 = vmatpush1.msra.mxu0 0.0
        %690 = vmatprep.subr.mxu0 0.0
        %691 = vmatpush1.msra.mxu0 0.0
        %692 = vmatprep.subr.mxu0 0.0
        %693 = vmatpush1.msra.mxu0 0.0
        %694 = vmatprep.subr.mxu0 0.0
        %695 = vmatpush1.msra.mxu0 0.0
        %696 = vmatprep.subr.mxu0 0.0
        %697 = vmatpush1.msra.mxu0 0.0
        %698 = vmatprep.subr.mxu0 0.0
        %699 = vmatpush1.msra.mxu0 0.0
        %700 = vmatprep.subr.mxu0 0.0
        %701 = vmatpush1.msra.mxu0 0.0
        %702 = vmatprep.mubr.f32.mxu0 0.0
        %703 = vmatmul.mubr.f32.gmra.mrb[0].mxu0 %v636
        %v704 = vpop.f32.mrb[0].mxu0
        %v705 = vadd.f32 0.0, %v704
        %v706 = vpop.f32.mrb[0].mxu0
        %707 = vdwg.mxu0
        %v708 = vmax.f32 %v705, 1.1754944e-38
        %v709 = vlog2.pop %v708
        %v710 = vmul.f32 %v709, 0.6931472
        %v711 = vadd.f32 %v599, %v710
        %v712 = vmin.f32 %v395, 0.0
        %v713 = vand.u32 2147483647, %v395
        %v714 = vsub.f32 0.0, %v713
        %v715 = vmul.f32 %v714, 1.442695
        %v716 = vpow.pop %v715
        %v717 = vadd.f32 %v716, 1.0
        %v718 = vlog2.pop %v717
        %v719 = vmul.f32 %v718, 0.6931472
        %v720 = vsub.f32 %v712, %v719
        %v721 = vmin.f32 %v399, 0.0
        %v722 = vand.u32 2147483647, %v399
        %v723 = vsub.f32 0.0, %v722
        %v724 = vmul.f32 %v723, 1.442695
        %v725 = vpow.pop %v724
        %v726 = vadd.f32 %v725, 1.0
        %v727 = vlog2.pop %v726
        %v728 = vmul.f32 %v727, 0.6931472
        %v729 = vsub.f32 %v721, %v728
        %v730 = vmul.f32 %v573, 2.0
        %v731 = vsub.f32 %v720, %v591
        %733 = vset.pattern.permute.xlu0 0
        %734 = vperm.xlu0 %733, %v731
        %v735 = vpop.permute.xlu0 %734
        %v737 = vadd.f32 %v730, %v735
        %738 = vxpose.xlu0.b32.start [1/16] %v729, 128
        %739 = vxpose.xlu0.b32.cont [2/16] 0.0, 128
        %740 = vxpose.xlu0.b32.cont [3/16] 0.0, 128
        %741 = vxpose.xlu0.b32.cont [4/16] 0.0, 128
        %742 = vxpose.xlu0.b32.cont [5/16] 0.0, 128
        %743 = vxpose.xlu0.b32.cont [6/16] 0.0, 128
        %744 = vxpose.xlu0.b32.cont [7/16] 0.0, 128
        %745 = vxpose.xlu0.b32.cont [8/16] 0.0, 128
        %746 = vxpose.xlu0.b32.cont [9/16] 0.0, 128
        %747 = vxpose.xlu0.b32.cont [10/16] 0.0, 128
        %748 = vxpose.xlu0.b32.cont [11/16] 0.0, 128
        %749 = vxpose.xlu0.b32.cont [12/16] 0.0, 128
        %750 = vxpose.xlu0.b32.cont [13/16] 0.0, 128
        %751 = vxpose.xlu0.b32.cont [14/16] 0.0, 128
        %752 = vxpose.xlu0.b32.cont [15/16] 0.0, 128
        %753 = vxpose.xlu0.b32.end [16/16] 0.0, 128
        %v754 = vpop.trf.xlu0
        %v755 = vpop.trf.xlu0
        %v756 = vpop.trf.xlu0
        %v757 = vpop.trf.xlu0
        %v758 = vpop.trf.xlu0
        %v759 = vpop.trf.xlu0
        %v760 = vpop.trf.xlu0
        %v761 = vpop.trf.xlu0
        %v762 = vpop.trf.xlu0
        %v763 = vpop.trf.xlu0
        %v764 = vpop.trf.xlu0
        %v765 = vpop.trf.xlu0
        %v766 = vpop.trf.xlu0
        %v767 = vpop.trf.xlu0
        %v768 = vpop.trf.xlu0
        %v769 = vpop.trf.xlu0
        %v770 = vsub.f32 %v754, %v711
        %v771 = vlaneseq
        %v772 = vshrl.u32 %v771, 7
        %v773 = vsub.s32 0, %v772
        %v774 = vrot.slane %v770, %v773
        %v775 = vadd.f32 %v737, %v774
        %776 = vst [vmem:[%s350] sm:$0xff] 0.0
        %777 = vst [vmem:[%s350 + $0x8] sm:$0xff] 0.0
        %778 = vst.msk [vmem:[%s350] sm:$0xff] %vm578, %v775
        %v779 = vsub.f32 0.0, %v395
        %v780 = vmin.f32 %v779, 0.0
        %v781 = vand.u32 2147483647, %v779
        %v782 = vsub.f32 0.0, %v781
        %v783 = vmul.f32 %v782, 1.442695
        %v784 = vpow.pop %v783
        %v785 = vadd.f32 %v784, 1.0
        %v786 = vlog2.pop %v785
        %v787 = vmul.f32 %v786, 0.6931472
        %v788 = vsub.f32 %v780, %v787
        %790 = vrot.lane.b32.xlu0 %v788, 8
        %v791 = vpop.permute.xlu0 %790
        %vm793 = vcmask 72768
        %794 = vst.msk [vmem:[%s350] sm:$0xff] %vm793, %v791
        %v795 = vsub.f32 0.0, %v399
        %v796 = vmin.f32 %v795, 0.0
        %v797 = vand.u32 2147483647, %v795
        %v798 = vsub.f32 0.0, %v797
        %v799 = vmul.f32 %v798, 1.442695
        %v800 = vpow.pop %v799
        %v801 = vadd.f32 %v800, 1.0
        %v802 = vlog2.pop %v801
        %v803 = vmul.f32 %v802, 0.6931472
        %v804 = vsub.f32 %v796, %v803
        %805 = vxpose.xlu0.b32.start [1/16] %v804, 128
        %806 = vxpose.xlu0.b32.cont [2/16] 0.0, 128
        %807 = vxpose.xlu0.b32.cont [3/16] 0.0, 128
        %808 = vxpose.xlu0.b32.cont [4/16] 0.0, 128
        %809 = vxpose.xlu0.b32.cont [5/16] 0.0, 128
        %810 = vxpose.xlu0.b32.cont [6/16] 0.0, 128
        %811 = vxpose.xlu0.b32.cont [7/16] 0.0, 128
        %812 = vxpose.xlu0.b32.cont [8/16] 0.0, 128
        %813 = vxpose.xlu0.b32.cont [9/16] 0.0, 128
        %814 = vxpose.xlu0.b32.cont [10/16] 0.0, 128
        %815 = vxpose.xlu0.b32.cont [11/16] 0.0, 128
        %816 = vxpose.xlu0.b32.cont [12/16] 0.0, 128
        %817 = vxpose.xlu0.b32.cont [13/16] 0.0, 128
        %818 = vxpose.xlu0.b32.cont [14/16] 0.0, 128
        %819 = vxpose.xlu0.b32.cont [15/16] 0.0, 128
        %820 = vxpose.xlu0.b32.end [16/16] 0.0, 128
        %v821 = vpop.trf.xlu0
        %v822 = vpop.trf.xlu0
        %v823 = vpop.trf.xlu0
        %v824 = vpop.trf.xlu0
        %v825 = vpop.trf.xlu0
        %v826 = vpop.trf.xlu0
        %v827 = vpop.trf.xlu0
        %v828 = vpop.trf.xlu0
        %v829 = vpop.trf.xlu0
        %v830 = vpop.trf.xlu0
        %v831 = vpop.trf.xlu0
        %v832 = vpop.trf.xlu0
        %v833 = vpop.trf.xlu0
        %v834 = vpop.trf.xlu0
        %v835 = vpop.trf.xlu0
        %v836 = vpop.trf.xlu0
        %vm837 = vcmask 57344
        %838 = vst.msk [vmem:[%s350 + $0x8] sm:$0x1] %vm837, %v821
        %s839 = sand.u32 %s177, 1
        %s840 = scalar_lea.sflag [#allocation5], %s839
        %s841 = sand.u32 %s177, 1
        %s842 = smul.addr %s841, 16
        %s843 = scalar_lea.vmem [#allocation9], %s842
        %s844 = sand.u32 %s203, 1
        %s845 = scalar_lea.sflag [#allocation11], %s844
        %s846 = sand.u32 %s203, 1
        %s847 = smul.addr %s846, 8
        %s848 = scalar_lea.vmem [#allocation10], %s847
        // Predicated region
        $region57: #{tpu_custom_call.1} parent=43 // pred_check
          %p849 = pneg %p187
        $region58: #{tpu_custom_call.1} parent=43 // pred_check_branch
          %851 = sbr.rel (%p849) target = $region60
        $region59: #{tpu_custom_call.1} parent=43 // pred_region
          %s853 = ssub.s32 256, 256
          %854 = vsyncadd %s840, %s853
          %s855 = smul.addr %s33, 2
          %s856 = smul.addr %s855, 128
          %s857 = scalar_lea.hbm %s6, %s856
          %s858 = sshll.u32 %s843, 4
          %s859 = int_to_ptr.vmem [resolvable:$true] %s858
          %864 = dma.vmem_to_hbm [thread:$0]  %s859, 256, %s857, %s840, 128, 128, 8
        $region60: #{tpu_custom_call.1} parent=43 // pred_fallthru
          _
        // Predicated region
        $region61: #{tpu_custom_call.1} parent=43 // pred_check
          %p865 = pneg %p213
        $region62: #{tpu_custom_call.1} parent=43 // pred_check_branch
          %867 = sbr.rel (%p865) target = $region64
        $region63: #{tpu_custom_call.1} parent=43 // pred_region
          %s869 = ssub.s32 128, 128
          %870 = vsyncadd %s845, %s869
          %s871 = smul.addr %s33, 128
          %s872 = scalar_lea.hbm %s7, %s871
          %s874 = sshll.u32 %s848, 4
          %s875 = int_to_ptr.vmem [resolvable:$true] %s874
          %877 = dma.vmem_to_hbm [thread:$0]  %s875, 128, %s872, %s845
        $region64: #{tpu_custom_call.1} parent=43 // pred_fallthru
          _
      $region44: #{tpu_custom_call.1} parent=5 // pred_fallthru
        _
      %p878 = scmp.le.s32.totalorder 2, %s28
      // Predicated region
      $region65: #{tpu_custom_call.1} parent=5 // pred_check
        %p879 = pneg %p878
      $region66: #{tpu_custom_call.1} parent=5 // pred_check_branch
        %881 = sbr.rel (%p879) target = $region68
      $region67: #{tpu_custom_call.1} parent=5 // pred_region
        %s882 = ssub.s32 %s28, 2
        // Predicated region
        $region69: #{tpu_custom_call.1} parent=67 // pred_check
          %p883 = pneg %p193
        $region70: #{tpu_custom_call.1} parent=67 // pred_check_branch
          %885 = sbr.rel (%p883) target = $region72
        $region71: #{tpu_custom_call.1} parent=67 // pred_region
          %s886 = sand.u32 %s178, 1
          %s887 = scalar_lea.sflag [#allocation5], %s886
          %s888 = sand.u32 %s178, 1
          %s889 = smul.addr %s888, 16
          %s890 = scalar_lea.vmem [#allocation9], %s889
          %891 = dma.done %s887, 256
        $region72: #{tpu_custom_call.1} parent=67 // pred_fallthru
          _
        // Predicated region
        $region73: #{tpu_custom_call.1} parent=67 // pred_check
          %p892 = pneg %p219
        $region74: #{tpu_custom_call.1} parent=67 // pred_check_branch
          %894 = sbr.rel (%p892) target = $region76
        $region75: #{tpu_custom_call.1} parent=67 // pred_region
          %s895 = sand.u32 %s204, 1
          %s896 = scalar_lea.sflag [#allocation11], %s895
          %s897 = sand.u32 %s204, 1
          %s898 = smul.addr %s897, 8
          %s899 = scalar_lea.vmem [#allocation10], %s898
          %900 = dma.done %s896, 128
        $region76: #{tpu_custom_call.1} parent=67 // pred_fallthru
          _
      $region68: #{tpu_custom_call.1} parent=5 // pred_fallthru
        _
    $region6: #{tpu_custom_call.1} parent=1 // loop_footer
      %s32 = sadd.s32 1, %s28
    $region7: #{tpu_custom_call.1} parent=1 // loop_footer_branch
      %27 = sbr.rel target = $region3
    $region8: #{tpu_custom_call.1} parent=1 // loop_exit
      _
    %901 = vsyncpa [#allocation4], 1
    %s902 = scalar_lea.sflag [#allocation4], 1
    %903 = vsyncpa %s902, 1
    %904 = vsyncpa [#allocation7], 1
    %s905 = scalar_lea.sflag [#allocation7], 1
    %906 = vsyncpa %s905, 1
    %907 = vsyncpa [#allocation5], 1
    %s908 = scalar_lea.sflag [#allocation5], 1
    %909 = vsyncpa %s908, 1
    %910 = vsyncpa [#allocation11], 1
    %s911 = scalar_lea.sflag [#allocation11], 1
    %912 = vsyncpa %s911, 1

</llo_original>
